<compile_context>
chip_gen: v5e
topology: v5e:2x2
jax: 0.10.0
libtpu: 0.0.40
codegen_flags: <defaults>
</compile_context>

<pallas_src>
import functools

import numpy as np
import jax
import jax.numpy as jnp
from jax import lax
from jax.experimental import pallas as pl
from jax.experimental.pallas import tpu as pltpu


# ----------------------------------------------------------------------------
# Parameter setup (host-side numpy glue: cv2.getGaborKernel + calc_lambda)
# ----------------------------------------------------------------------------
def calc_lambda(sigma, bandwidth):
    p = 2.0 ** bandwidth
    c = np.sqrt(np.log(2.0) / 2.0)
    return sigma * np.pi / c * (p - 1.0) / (p + 1.0)


def cv2_get_gabor_kernel(ksize, sigma, theta, lambd, gamma, psi):
    """Exact re-implementation of cv2.getGaborKernel (ktype=CV_64F)."""
    sigma_x = sigma
    sigma_y = sigma / gamma
    xmax = ksize[0] // 2  # ksize = (width, height)
    ymax = ksize[1] // 2
    c, s = np.cos(theta), np.sin(theta)
    ex = -0.5 / (sigma_x * sigma_x)
    ey = -0.5 / (sigma_y * sigma_y)
    cscale = 2.0 * np.pi / lambd
    kernel = np.zeros((2 * ymax + 1, 2 * xmax + 1), dtype=np.float64)
    for y in range(-ymax, ymax + 1):
        for x in range(-xmax, xmax + 1):
            xr = x * c + y * s
            yr = -x * s + y * c
            v = np.exp(ex * xr * xr + ey * yr * yr) * np.cos(cscale * xr + psi)
            kernel[ymax - y, xmax - x] = v
    return kernel


def build_gabor_kernel_2d(input_dict):
    """The single 2D kernel from the LAST iteration of calculate_weights()."""
    sigma = input_dict["sigmas"][-1]
    theta = input_dict["thetas"][-1]
    b = input_dict["bs"][-1]
    gamma = input_dict["gammas"][-1]
    psi = input_dict["psis"][-1]
    lambd = calc_lambda(sigma, b)
    gf = cv2_get_gabor_kernel(input_dict["ksize"], sigma, theta, lambd, gamma, psi)
    # torch assigns float64 data into a float32 Parameter
    return gf.astype(np.float32)


def build_gabor_weight(out_channels, in_channels, input_dict):
    """Full OIHW conv weight (every [o, i] slice identical) -- reference only.

    NOTE: the whole kernel below relies on this degeneracy (identical slices
    over O and C).  If the source module ever gets per-filter weights, groups,
    or bias, the channel-sum + O-broadcast trick becomes invalid.
    """
    g = build_gabor_kernel_2d(input_dict)
    w = np.broadcast_to(g, (out_channels, in_channels) + g.shape).copy()
    return jnp.asarray(w)  # [O, C, KH, KW]


# ----------------------------------------------------------------------------
# Pallas kernel: fused channel-sum + 49-tap "valid" correlation.
#   grid step n: one image.  x block [1, C, H, W] -> VMEM, g taps in SMEM.
#   y1[n, oh, ow] = sum_{ky,kx} g[ky,kx] * (sum_c x[n, c, oh+ky, ow+kx])
# ----------------------------------------------------------------------------
def _gabor_fused_kernel(g_ref, x_ref, o_ref, *, KH, KW, OH, OW):
    # Channel pre-sum in-register: every (o, c) weight slice is the same Gabor
    # kernel, so conv(x, w)[n, o] == corr2d(sum_c x[n, c], g) for every o.
    xs = jnp.sum(x_ref[0].astype(jnp.float32), axis=0)            # [H, W]

    # Statically unrolled KH*KW-tap correlation: shifted (static-slice) reads
    # of the VMEM-resident slab, scalar tap weights from SMEM, VPU FMAs.
    acc = jnp.zeros((OH, OW), jnp.float32)
    for ky in range(KH):
        for kx in range(KW):
            acc = acc + g_ref[ky * KW + kx] * xs[ky:ky + OH, kx:kx + OW]
    o_ref[0] = acc.astype(o_ref.dtype)


def gabor_conv_forward(x, gabor_kernel_2d, out_channels):
    """x: [N, C, H, W]; gabor_kernel_2d: [KH, KW] -> y: [N, O, OH, OW] (NCHW)."""
    N, C, H, W = x.shape
    KH, KW = gabor_kernel_2d.shape
    OH, OW = H - KH + 1, W - KW + 1

    g_flat = jnp.asarray(gabor_kernel_2d, jnp.float32).reshape(KH * KW)

    # TODO(synk): for large H, grid over (N, output-row tiles) with a halo'd
    # (C, tileH + KH - 1, W) input slab (overlapping element-offset index_map
    # or manual DMA) instead of a whole image per step; and pad W to a multiple
    # of 128 (or use pltpu.roll for the kx shifts) to keep loads/stores
    # lane-dense.  At these sizes one image per step is already tiny vs VMEM.
    kernel = functools.partial(_gabor_fused_kernel, KH=KH, KW=KW, OH=OH, OW=OW)
    y1 = pl.pallas_call(
        kernel,
        out_shape=jax.ShapeDtypeStruct((N, OH, OW), jnp.float32),
        grid=(N,),
        in_specs=[
            # Gabor taps: whole (KH*KW,) vector resident in SMEM (scalar reads).
            pl.BlockSpec(memory_space=pltpu.MemorySpace.SMEM),
            # One full image per grid step; last two dims equal the array dims.
            pl.BlockSpec((1, C, H, W), lambda n: (n, 0, 0, 0)),
        ],
        out_specs=pl.BlockSpec((1, OH, OW), lambda n: (n, 0, 0)),
        compiler_params=pltpu.CompilerParams(
            dimension_semantics=("parallel",),
            vmem_limit_bytes=32 * 1024 * 1024,
        ),
    )(g_flat, x)

    # Output channels are identical (degenerate weight): pure broadcast to NCHW.
    return jnp.broadcast_to(y1[:, None, :, :], (N, out_channels, OH, OW))


if __name__ == "__main__":
    # Small shapes: batch=2, in_channels=4, out_channels=8, spatial=16, kernel=7
    in_channels, out_channels, kernel_size = 4, 8, 7
    input_dict = {
        "ksize": (kernel_size, kernel_size),
        "gammas": [0.5],
        "bs": np.linspace(1, 2.6, num=3).tolist(),
        "sigmas": [8],
        "thetas": np.linspace(0, np.pi, 4, endpoint=False).tolist(),
        "psis": [np.pi / 2, 3 * np.pi / 2],
    }

    g2d = jnp.asarray(build_gabor_kernel_2d(input_dict))       # [7, 7]

    key = jax.random.PRNGKey(0)
    x = jax.random.normal(key, (2, in_channels, 16, 16), dtype=jnp.float32)

    y = gabor_conv_forward(x, g2d, out_channels)
    y = jax.block_until_ready(y)

    # Correctness check against XLA's conv with the full (broadcast) OIHW weight.
    weight = build_gabor_weight(out_channels, in_channels, input_dict)
    y_ref = lax.conv_general_dilated(
        x, weight, window_strides=(1, 1), padding="VALID",
        dimension_numbers=("NCHW", "OIHW", "NCHW"),
    )
    assert y.shape == (2, out_channels, 10, 10), y.shape
    np.testing.assert_allclose(np.asarray(y), np.asarray(y_ref), rtol=1e-3, atol=1e-3)

    print("KERNEL_OK")
</pallas_src>

<mosaic_0001>
module attributes {stable_mosaic.version = 11 : i64} {
  func.func @_gabor_fused_kernel(%arg0: i32, %arg1: memref<49xf32, #tpu.memory_space<smem>>, %arg2: memref<1x4x16x16xf32, #tpu.memory_space<vmem>>, %arg3: memref<1x10x10xf32, #tpu.memory_space<vmem>>) attributes {dimension_semantics = [#tpu.dimension_semantics<parallel>], iteration_bounds = array<i64: 2>, scalar_prefetch = 0 : i64, scratch_operands = 0 : i64, tpu.core_type = #tpu.core_type<tc>, window_params = [{transform_indices = @transform_0, window_bounds = array<i64: 49>}, {transform_indices = @transform_1, window_bounds = array<i64: 1, 4, 16, 16>}, {transform_indices = @transform_2, window_bounds = array<i64: 1, 10, 10>}]} {
    %c0 = arith.constant 0 : index
    %c0_0 = arith.constant 0 : index
    %c0_1 = arith.constant 0 : index
    %c0_2 = arith.constant 0 : index
    %0 = vector.load %arg2[%c0, %c0_0, %c0_1, %c0_2] : memref<1x4x16x16xf32, #tpu.memory_space<vmem>>, vector<1x4x16x16xf32>
    %1 = vector.shape_cast %0 : vector<1x4x16x16xf32> to vector<4x16x16xf32>
    %cst = arith.constant dense<0.000000e+00> : vector<16x16xf32>
    %2 = vector.multi_reduction <add>, %1, %cst [0] : vector<4x16x16xf32> to vector<16x16xf32>
    %cst_3 = arith.constant 0.000000e+00 : f32
    %3 = vector.broadcast %cst_3 : f32 to vector<10x10xf32>
    %c0_4 = arith.constant 0 : index
    %4 = memref.load %arg1[%c0_4] : memref<49xf32, #tpu.memory_space<smem>>
    %5 = vector.extract_strided_slice %2 {offsets = [0, 0], sizes = [10, 10], strides = [1, 1]} : vector<16x16xf32> to vector<10x10xf32>
    %6 = vector.broadcast %4 : f32 to vector<10x10xf32>
    %7 = arith.mulf %6, %5 : vector<10x10xf32>
    %8 = arith.addf %3, %7 : vector<10x10xf32>
    %c1 = arith.constant 1 : index
    %9 = memref.load %arg1[%c1] : memref<49xf32, #tpu.memory_space<smem>>
    %10 = vector.extract_strided_slice %2 {offsets = [0, 1], sizes = [10, 10], strides = [1, 1]} : vector<16x16xf32> to vector<10x10xf32>
    %11 = vector.broadcast %9 : f32 to vector<10x10xf32>
    %12 = arith.mulf %11, %10 : vector<10x10xf32>
    %13 = arith.addf %8, %12 : vector<10x10xf32>
    %c2 = arith.constant 2 : index
    %14 = memref.load %arg1[%c2] : memref<49xf32, #tpu.memory_space<smem>>
    %15 = vector.extract_strided_slice %2 {offsets = [0, 2], sizes = [10, 10], strides = [1, 1]} : vector<16x16xf32> to vector<10x10xf32>
    %16 = vector.broadcast %14 : f32 to vector<10x10xf32>
    %17 = arith.mulf %16, %15 : vector<10x10xf32>
    %18 = arith.addf %13, %17 : vector<10x10xf32>
    %c3 = arith.constant 3 : index
    %19 = memref.load %arg1[%c3] : memref<49xf32, #tpu.memory_space<smem>>
    %20 = vector.extract_strided_slice %2 {offsets = [0, 3], sizes = [10, 10], strides = [1, 1]} : vector<16x16xf32> to vector<10x10xf32>
    %21 = vector.broadcast %19 : f32 to vector<10x10xf32>
    %22 = arith.mulf %21, %20 : vector<10x10xf32>
    %23 = arith.addf %18, %22 : vector<10x10xf32>
    %c4 = arith.constant 4 : index
    %24 = memref.load %arg1[%c4] : memref<49xf32, #tpu.memory_space<smem>>
    %25 = vector.extract_strided_slice %2 {offsets = [0, 4], sizes = [10, 10], strides = [1, 1]} : vector<16x16xf32> to vector<10x10xf32>
    %26 = vector.broadcast %24 : f32 to vector<10x10xf32>
    %27 = arith.mulf %26, %25 : vector<10x10xf32>
    %28 = arith.addf %23, %27 : vector<10x10xf32>
    %c5 = arith.constant 5 : index
    %29 = memref.load %arg1[%c5] : memref<49xf32, #tpu.memory_space<smem>>
    %30 = vector.extract_strided_slice %2 {offsets = [0, 5], sizes = [10, 10], strides = [1, 1]} : vector<16x16xf32> to vector<10x10xf32>
    %31 = vector.broadcast %29 : f32 to vector<10x10xf32>
    %32 = arith.mulf %31, %30 : vector<10x10xf32>
    %33 = arith.addf %28, %32 : vector<10x10xf32>
    %c6 = arith.constant 6 : index
    %34 = memref.load %arg1[%c6] : memref<49xf32, #tpu.memory_space<smem>>
    %35 = vector.extract_strided_slice %2 {offsets = [0, 6], sizes = [10, 10], strides = [1, 1]} : vector<16x16xf32> to vector<10x10xf32>
    %36 = vector.broadcast %34 : f32 to vector<10x10xf32>
    %37 = arith.mulf %36, %35 : vector<10x10xf32>
    %38 = arith.addf %33, %37 : vector<10x10xf32>
    %c7 = arith.constant 7 : index
    %39 = memref.load %arg1[%c7] : memref<49xf32, #tpu.memory_space<smem>>
    %40 = vector.extract_strided_slice %2 {offsets = [1, 0], sizes = [10, 10], strides = [1, 1]} : vector<16x16xf32> to vector<10x10xf32>
    %41 = vector.broadcast %39 : f32 to vector<10x10xf32>
    %42 = arith.mulf %41, %40 : vector<10x10xf32>
    %43 = arith.addf %38, %42 : vector<10x10xf32>
    %c8 = arith.constant 8 : index
    %44 = memref.load %arg1[%c8] : memref<49xf32, #tpu.memory_space<smem>>
    %45 = vector.extract_strided_slice %2 {offsets = [1, 1], sizes = [10, 10], strides = [1, 1]} : vector<16x16xf32> to vector<10x10xf32>
    %46 = vector.broadcast %44 : f32 to vector<10x10xf32>
    %47 = arith.mulf %46, %45 : vector<10x10xf32>
    %48 = arith.addf %43, %47 : vector<10x10xf32>
    %c9 = arith.constant 9 : index
    %49 = memref.load %arg1[%c9] : memref<49xf32, #tpu.memory_space<smem>>
    %50 = vector.extract_strided_slice %2 {offsets = [1, 2], sizes = [10, 10], strides = [1, 1]} : vector<16x16xf32> to vector<10x10xf32>
    %51 = vector.broadcast %49 : f32 to vector<10x10xf32>
    %52 = arith.mulf %51, %50 : vector<10x10xf32>
    %53 = arith.addf %48, %52 : vector<10x10xf32>
    %c10 = arith.constant 10 : index
    %54 = memref.load %arg1[%c10] : memref<49xf32, #tpu.memory_space<smem>>
    %55 = vector.extract_strided_slice %2 {offsets = [1, 3], sizes = [10, 10], strides = [1, 1]} : vector<16x16xf32> to vector<10x10xf32>
    %56 = vector.broadcast %54 : f32 to vector<10x10xf32>
    %57 = arith.mulf %56, %55 : vector<10x10xf32>
    %58 = arith.addf %53, %57 : vector<10x10xf32>
    %c11 = arith.constant 11 : index
    %59 = memref.load %arg1[%c11] : memref<49xf32, #tpu.memory_space<smem>>
    %60 = vector.extract_strided_slice %2 {offsets = [1, 4], sizes = [10, 10], strides = [1, 1]} : vector<16x16xf32> to vector<10x10xf32>
    %61 = vector.broadcast %59 : f32 to vector<10x10xf32>
    %62 = arith.mulf %61, %60 : vector<10x10xf32>
    %63 = arith.addf %58, %62 : vector<10x10xf32>
    %c12 = arith.constant 12 : index
    %64 = memref.load %arg1[%c12] : memref<49xf32, #tpu.memory_space<smem>>
    %65 = vector.extract_strided_slice %2 {offsets = [1, 5], sizes = [10, 10], strides = [1, 1]} : vector<16x16xf32> to vector<10x10xf32>
    %66 = vector.broadcast %64 : f32 to vector<10x10xf32>
    %67 = arith.mulf %66, %65 : vector<10x10xf32>
    %68 = arith.addf %63, %67 : vector<10x10xf32>
    %c13 = arith.constant 13 : index
    %69 = memref.load %arg1[%c13] : memref<49xf32, #tpu.memory_space<smem>>
    %70 = vector.extract_strided_slice %2 {offsets = [1, 6], sizes = [10, 10], strides = [1, 1]} : vector<16x16xf32> to vector<10x10xf32>
    %71 = vector.broadcast %69 : f32 to vector<10x10xf32>
    %72 = arith.mulf %71, %70 : vector<10x10xf32>
    %73 = arith.addf %68, %72 : vector<10x10xf32>
    %c14 = arith.constant 14 : index
    %74 = memref.load %arg1[%c14] : memref<49xf32, #tpu.memory_space<smem>>
    %75 = vector.extract_strided_slice %2 {offsets = [2, 0], sizes = [10, 10], strides = [1, 1]} : vector<16x16xf32> to vector<10x10xf32>
    %76 = vector.broadcast %74 : f32 to vector<10x10xf32>
    %77 = arith.mulf %76, %75 : vector<10x10xf32>
    %78 = arith.addf %73, %77 : vector<10x10xf32>
    %c15 = arith.constant 15 : index
    %79 = memref.load %arg1[%c15] : memref<49xf32, #tpu.memory_space<smem>>
    %80 = vector.extract_strided_slice %2 {offsets = [2, 1], sizes = [10, 10], strides = [1, 1]} : vector<16x16xf32> to vector<10x10xf32>
    %81 = vector.broadcast %79 : f32 to vector<10x10xf32>
    %82 = arith.mulf %81, %80 : vector<10x10xf32>
    %83 = arith.addf %78, %82 : vector<10x10xf32>
    %c16 = arith.constant 16 : index
    %84 = memref.load %arg1[%c16] : memref<49xf32, #tpu.memory_space<smem>>
    %85 = vector.extract_strided_slice %2 {offsets = [2, 2], sizes = [10, 10], strides = [1, 1]} : vector<16x16xf32> to vector<10x10xf32>
    %86 = vector.broadcast %84 : f32 to vector<10x10xf32>
    %87 = arith.mulf %86, %85 : vector<10x10xf32>
    %88 = arith.addf %83, %87 : vector<10x10xf32>
    %c17 = arith.constant 17 : index
    %89 = memref.load %arg1[%c17] : memref<49xf32, #tpu.memory_space<smem>>
    %90 = vector.extract_strided_slice %2 {offsets = [2, 3], sizes = [10, 10], strides = [1, 1]} : vector<16x16xf32> to vector<10x10xf32>
    %91 = vector.broadcast %89 : f32 to vector<10x10xf32>
    %92 = arith.mulf %91, %90 : vector<10x10xf32>
    %93 = arith.addf %88, %92 : vector<10x10xf32>
    %c18 = arith.constant 18 : index
    %94 = memref.load %arg1[%c18] : memref<49xf32, #tpu.memory_space<smem>>
    %95 = vector.extract_strided_slice %2 {offsets = [2, 4], sizes = [10, 10], strides = [1, 1]} : vector<16x16xf32> to vector<10x10xf32>
    %96 = vector.broadcast %94 : f32 to vector<10x10xf32>
    %97 = arith.mulf %96, %95 : vector<10x10xf32>
    %98 = arith.addf %93, %97 : vector<10x10xf32>
    %c19 = arith.constant 19 : index
    %99 = memref.load %arg1[%c19] : memref<49xf32, #tpu.memory_space<smem>>
    %100 = vector.extract_strided_slice %2 {offsets = [2, 5], sizes = [10, 10], strides = [1, 1]} : vector<16x16xf32> to vector<10x10xf32>
    %101 = vector.broadcast %99 : f32 to vector<10x10xf32>
    %102 = arith.mulf %101, %100 : vector<10x10xf32>
    %103 = arith.addf %98, %102 : vector<10x10xf32>
    %c20 = arith.constant 20 : index
    %104 = memref.load %arg1[%c20] : memref<49xf32, #tpu.memory_space<smem>>
    %105 = vector.extract_strided_slice %2 {offsets = [2, 6], sizes = [10, 10], strides = [1, 1]} : vector<16x16xf32> to vector<10x10xf32>
    %106 = vector.broadcast %104 : f32 to vector<10x10xf32>
    %107 = arith.mulf %106, %105 : vector<10x10xf32>
    %108 = arith.addf %103, %107 : vector<10x10xf32>
    %c21 = arith.constant 21 : index
    %109 = memref.load %arg1[%c21] : memref<49xf32, #tpu.memory_space<smem>>
    %110 = vector.extract_strided_slice %2 {offsets = [3, 0], sizes = [10, 10], strides = [1, 1]} : vector<16x16xf32> to vector<10x10xf32>
    %111 = vector.broadcast %109 : f32 to vector<10x10xf32>
    %112 = arith.mulf %111, %110 : vector<10x10xf32>
    %113 = arith.addf %108, %112 : vector<10x10xf32>
    %c22 = arith.constant 22 : index
    %114 = memref.load %arg1[%c22] : memref<49xf32, #tpu.memory_space<smem>>
    %115 = vector.extract_strided_slice %2 {offsets = [3, 1], sizes = [10, 10], strides = [1, 1]} : vector<16x16xf32> to vector<10x10xf32>
    %116 = vector.broadcast %114 : f32 to vector<10x10xf32>
    %117 = arith.mulf %116, %115 : vector<10x10xf32>
    %118 = arith.addf %113, %117 : vector<10x10xf32>
    %c23 = arith.constant 23 : index
    %119 = memref.load %arg1[%c23] : memref<49xf32, #tpu.memory_space<smem>>
    %120 = vector.extract_strided_slice %2 {offsets = [3, 2], sizes = [10, 10], strides = [1, 1]} : vector<16x16xf32> to vector<10x10xf32>
    %121 = vector.broadcast %119 : f32 to vector<10x10xf32>
    %122 = arith.mulf %121, %120 : vector<10x10xf32>
    %123 = arith.addf %118, %122 : vector<10x10xf32>
    %c24 = arith.constant 24 : index
    %124 = memref.load %arg1[%c24] : memref<49xf32, #tpu.memory_space<smem>>
    %125 = vector.extract_strided_slice %2 {offsets = [3, 3], sizes = [10, 10], strides = [1, 1]} : vector<16x16xf32> to vector<10x10xf32>
    %126 = vector.broadcast %124 : f32 to vector<10x10xf32>
    %127 = arith.mulf %126, %125 : vector<10x10xf32>
    %128 = arith.addf %123, %127 : vector<10x10xf32>
    %c25 = arith.constant 25 : index
    %129 = memref.load %arg1[%c25] : memref<49xf32, #tpu.memory_space<smem>>
    %130 = vector.extract_strided_slice %2 {offsets = [3, 4], sizes = [10, 10], strides = [1, 1]} : vector<16x16xf32> to vector<10x10xf32>
    %131 = vector.broadcast %129 : f32 to vector<10x10xf32>
    %132 = arith.mulf %131, %130 : vector<10x10xf32>
    %133 = arith.addf %128, %132 : vector<10x10xf32>
    %c26 = arith.constant 26 : index
    %134 = memref.load %arg1[%c26] : memref<49xf32, #tpu.memory_space<smem>>
    %135 = vector.extract_strided_slice %2 {offsets = [3, 5], sizes = [10, 10], strides = [1, 1]} : vector<16x16xf32> to vector<10x10xf32>
    %136 = vector.broadcast %134 : f32 to vector<10x10xf32>
    %137 = arith.mulf %136, %135 : vector<10x10xf32>
    %138 = arith.addf %133, %137 : vector<10x10xf32>
    %c27 = arith.constant 27 : index
    %139 = memref.load %arg1[%c27] : memref<49xf32, #tpu.memory_space<smem>>
    %140 = vector.extract_strided_slice %2 {offsets = [3, 6], sizes = [10, 10], strides = [1, 1]} : vector<16x16xf32> to vector<10x10xf32>
    %141 = vector.broadcast %139 : f32 to vector<10x10xf32>
    %142 = arith.mulf %141, %140 : vector<10x10xf32>
    %143 = arith.addf %138, %142 : vector<10x10xf32>
    %c28 = arith.constant 28 : index
    %144 = memref.load %arg1[%c28] : memref<49xf32, #tpu.memory_space<smem>>
    %145 = vector.extract_strided_slice %2 {offsets = [4, 0], sizes = [10, 10], strides = [1, 1]} : vector<16x16xf32> to vector<10x10xf32>
    %146 = vector.broadcast %144 : f32 to vector<10x10xf32>
    %147 = arith.mulf %146, %145 : vector<10x10xf32>
    %148 = arith.addf %143, %147 : vector<10x10xf32>
    %c29 = arith.constant 29 : index
    %149 = memref.load %arg1[%c29] : memref<49xf32, #tpu.memory_space<smem>>
    %150 = vector.extract_strided_slice %2 {offsets = [4, 1], sizes = [10, 10], strides = [1, 1]} : vector<16x16xf32> to vector<10x10xf32>
    %151 = vector.broadcast %149 : f32 to vector<10x10xf32>
    %152 = arith.mulf %151, %150 : vector<10x10xf32>
    %153 = arith.addf %148, %152 : vector<10x10xf32>
    %c30 = arith.constant 30 : index
    %154 = memref.load %arg1[%c30] : memref<49xf32, #tpu.memory_space<smem>>
    %155 = vector.extract_strided_slice %2 {offsets = [4, 2], sizes = [10, 10], strides = [1, 1]} : vector<16x16xf32> to vector<10x10xf32>
    %156 = vector.broadcast %154 : f32 to vector<10x10xf32>
    %157 = arith.mulf %156, %155 : vector<10x10xf32>
    %158 = arith.addf %153, %157 : vector<10x10xf32>
    %c31 = arith.constant 31 : index
    %159 = memref.load %arg1[%c31] : memref<49xf32, #tpu.memory_space<smem>>
    %160 = vector.extract_strided_slice %2 {offsets = [4, 3], sizes = [10, 10], strides = [1, 1]} : vector<16x16xf32> to vector<10x10xf32>
    %161 = vector.broadcast %159 : f32 to vector<10x10xf32>
    %162 = arith.mulf %161, %160 : vector<10x10xf32>
    %163 = arith.addf %158, %162 : vector<10x10xf32>
    %c32 = arith.constant 32 : index
    %164 = memref.load %arg1[%c32] : memref<49xf32, #tpu.memory_space<smem>>
    %165 = vector.extract_strided_slice %2 {offsets = [4, 4], sizes = [10, 10], strides = [1, 1]} : vector<16x16xf32> to vector<10x10xf32>
    %166 = vector.broadcast %164 : f32 to vector<10x10xf32>
    %167 = arith.mulf %166, %165 : vector<10x10xf32>
    %168 = arith.addf %163, %167 : vector<10x10xf32>
    %c33 = arith.constant 33 : index
    %169 = memref.load %arg1[%c33] : memref<49xf32, #tpu.memory_space<smem>>
    %170 = vector.extract_strided_slice %2 {offsets = [4, 5], sizes = [10, 10], strides = [1, 1]} : vector<16x16xf32> to vector<10x10xf32>
    %171 = vector.broadcast %169 : f32 to vector<10x10xf32>
    %172 = arith.mulf %171, %170 : vector<10x10xf32>
    %173 = arith.addf %168, %172 : vector<10x10xf32>
    %c34 = arith.constant 34 : index
    %174 = memref.load %arg1[%c34] : memref<49xf32, #tpu.memory_space<smem>>
    %175 = vector.extract_strided_slice %2 {offsets = [4, 6], sizes = [10, 10], strides = [1, 1]} : vector<16x16xf32> to vector<10x10xf32>
    %176 = vector.broadcast %174 : f32 to vector<10x10xf32>
    %177 = arith.mulf %176, %175 : vector<10x10xf32>
    %178 = arith.addf %173, %177 : vector<10x10xf32>
    %c35 = arith.constant 35 : index
    %179 = memref.load %arg1[%c35] : memref<49xf32, #tpu.memory_space<smem>>
    %180 = vector.extract_strided_slice %2 {offsets = [5, 0], sizes = [10, 10], strides = [1, 1]} : vector<16x16xf32> to vector<10x10xf32>
    %181 = vector.broadcast %179 : f32 to vector<10x10xf32>
    %182 = arith.mulf %181, %180 : vector<10x10xf32>
    %183 = arith.addf %178, %182 : vector<10x10xf32>
    %c36 = arith.constant 36 : index
    %184 = memref.load %arg1[%c36] : memref<49xf32, #tpu.memory_space<smem>>
    %185 = vector.extract_strided_slice %2 {offsets = [5, 1], sizes = [10, 10], strides = [1, 1]} : vector<16x16xf32> to vector<10x10xf32>
    %186 = vector.broadcast %184 : f32 to vector<10x10xf32>
    %187 = arith.mulf %186, %185 : vector<10x10xf32>
    %188 = arith.addf %183, %187 : vector<10x10xf32>
    %c37 = arith.constant 37 : index
    %189 = memref.load %arg1[%c37] : memref<49xf32, #tpu.memory_space<smem>>
    %190 = vector.extract_strided_slice %2 {offsets = [5, 2], sizes = [10, 10], strides = [1, 1]} : vector<16x16xf32> to vector<10x10xf32>
    %191 = vector.broadcast %189 : f32 to vector<10x10xf32>
    %192 = arith.mulf %191, %190 : vector<10x10xf32>
    %193 = arith.addf %188, %192 : vector<10x10xf32>
    %c38 = arith.constant 38 : index
    %194 = memref.load %arg1[%c38] : memref<49xf32, #tpu.memory_space<smem>>
    %195 = vector.extract_strided_slice %2 {offsets = [5, 3], sizes = [10, 10], strides = [1, 1]} : vector<16x16xf32> to vector<10x10xf32>
    %196 = vector.broadcast %194 : f32 to vector<10x10xf32>
    %197 = arith.mulf %196, %195 : vector<10x10xf32>
    %198 = arith.addf %193, %197 : vector<10x10xf32>
    %c39 = arith.constant 39 : index
    %199 = memref.load %arg1[%c39] : memref<49xf32, #tpu.memory_space<smem>>
    %200 = vector.extract_strided_slice %2 {offsets = [5, 4], sizes = [10, 10], strides = [1, 1]} : vector<16x16xf32> to vector<10x10xf32>
    %201 = vector.broadcast %199 : f32 to vector<10x10xf32>
    %202 = arith.mulf %201, %200 : vector<10x10xf32>
    %203 = arith.addf %198, %202 : vector<10x10xf32>
    %c40 = arith.constant 40 : index
    %204 = memref.load %arg1[%c40] : memref<49xf32, #tpu.memory_space<smem>>
    %205 = vector.extract_strided_slice %2 {offsets = [5, 5], sizes = [10, 10], strides = [1, 1]} : vector<16x16xf32> to vector<10x10xf32>
    %206 = vector.broadcast %204 : f32 to vector<10x10xf32>
    %207 = arith.mulf %206, %205 : vector<10x10xf32>
    %208 = arith.addf %203, %207 : vector<10x10xf32>
    %c41 = arith.constant 41 : index
    %209 = memref.load %arg1[%c41] : memref<49xf32, #tpu.memory_space<smem>>
    %210 = vector.extract_strided_slice %2 {offsets = [5, 6], sizes = [10, 10], strides = [1, 1]} : vector<16x16xf32> to vector<10x10xf32>
    %211 = vector.broadcast %209 : f32 to vector<10x10xf32>
    %212 = arith.mulf %211, %210 : vector<10x10xf32>
    %213 = arith.addf %208, %212 : vector<10x10xf32>
    %c42 = arith.constant 42 : index
    %214 = memref.load %arg1[%c42] : memref<49xf32, #tpu.memory_space<smem>>
    %215 = vector.extract_strided_slice %2 {offsets = [6, 0], sizes = [10, 10], strides = [1, 1]} : vector<16x16xf32> to vector<10x10xf32>
    %216 = vector.broadcast %214 : f32 to vector<10x10xf32>
    %217 = arith.mulf %216, %215 : vector<10x10xf32>
    %218 = arith.addf %213, %217 : vector<10x10xf32>
    %c43 = arith.constant 43 : index
    %219 = memref.load %arg1[%c43] : memref<49xf32, #tpu.memory_space<smem>>
    %220 = vector.extract_strided_slice %2 {offsets = [6, 1], sizes = [10, 10], strides = [1, 1]} : vector<16x16xf32> to vector<10x10xf32>
    %221 = vector.broadcast %219 : f32 to vector<10x10xf32>
    %222 = arith.mulf %221, %220 : vector<10x10xf32>
    %223 = arith.addf %218, %222 : vector<10x10xf32>
    %c44 = arith.constant 44 : index
    %224 = memref.load %arg1[%c44] : memref<49xf32, #tpu.memory_space<smem>>
    %225 = vector.extract_strided_slice %2 {offsets = [6, 2], sizes = [10, 10], strides = [1, 1]} : vector<16x16xf32> to vector<10x10xf32>
    %226 = vector.broadcast %224 : f32 to vector<10x10xf32>
    %227 = arith.mulf %226, %225 : vector<10x10xf32>
    %228 = arith.addf %223, %227 : vector<10x10xf32>
    %c45 = arith.constant 45 : index
    %229 = memref.load %arg1[%c45] : memref<49xf32, #tpu.memory_space<smem>>
    %230 = vector.extract_strided_slice %2 {offsets = [6, 3], sizes = [10, 10], strides = [1, 1]} : vector<16x16xf32> to vector<10x10xf32>
    %231 = vector.broadcast %229 : f32 to vector<10x10xf32>
    %232 = arith.mulf %231, %230 : vector<10x10xf32>
    %233 = arith.addf %228, %232 : vector<10x10xf32>
    %c46 = arith.constant 46 : index
    %234 = memref.load %arg1[%c46] : memref<49xf32, #tpu.memory_space<smem>>
    %235 = vector.extract_strided_slice %2 {offsets = [6, 4], sizes = [10, 10], strides = [1, 1]} : vector<16x16xf32> to vector<10x10xf32>
    %236 = vector.broadcast %234 : f32 to vector<10x10xf32>
    %237 = arith.mulf %236, %235 : vector<10x10xf32>
    %238 = arith.addf %233, %237 : vector<10x10xf32>
    %c47 = arith.constant 47 : index
    %239 = memref.load %arg1[%c47] : memref<49xf32, #tpu.memory_space<smem>>
    %240 = vector.extract_strided_slice %2 {offsets = [6, 5], sizes = [10, 10], strides = [1, 1]} : vector<16x16xf32> to vector<10x10xf32>
    %241 = vector.broadcast %239 : f32 to vector<10x10xf32>
    %242 = arith.mulf %241, %240 : vector<10x10xf32>
    %243 = arith.addf %238, %242 : vector<10x10xf32>
    %c48 = arith.constant 48 : index
    %244 = memref.load %arg1[%c48] : memref<49xf32, #tpu.memory_space<smem>>
    %245 = vector.extract_strided_slice %2 {offsets = [6, 6], sizes = [10, 10], strides = [1, 1]} : vector<16x16xf32> to vector<10x10xf32>
    %246 = vector.broadcast %244 : f32 to vector<10x10xf32>
    %247 = arith.mulf %246, %245 : vector<10x10xf32>
    %248 = arith.addf %243, %247 : vector<10x10xf32>
    %c0_5 = arith.constant 0 : index
    %c0_6 = arith.constant 0 : index
    %c0_7 = arith.constant 0 : index
    %249 = vector.load %arg3[%c0_5, %c0_6, %c0_7] : memref<1x10x10xf32, #tpu.memory_space<vmem>>, vector<1x10x10xf32>
    %250 = vector.shape_cast %249 : vector<1x10x10xf32> to vector<10x10xf32>
    %251 = vector.shape_cast %248 : vector<10x10xf32> to vector<1x10x10xf32>
    tpu.vector_store %arg3[%c0_5, %c0_6, %c0_7], %251 {strides = array<i32>} : memref<1x10x10xf32, #tpu.memory_space<vmem>>, vector<1x10x10xf32>,
    return
  }
  func.func @transform_0(%arg0: i32) -> i32 {
    %c0_i32 = arith.constant 0 : i32
    %c0_i32_0 = arith.constant 0 : i32
    return %c0_i32 : i32
  }
  func.func @transform_1(%arg0: i32) -> (i32, i32, i32, i32) {
    %c0_i32 = arith.constant 0 : i32
    %c0_i32_0 = arith.constant 0 : i32
    %c0_i32_1 = arith.constant 0 : i32
    %c0_i32_2 = arith.constant 0 : i32
    return %arg0, %c0_i32, %c0_i32_0, %c0_i32_1 : i32, i32, i32, i32
  }
  func.func @transform_2(%arg0: i32) -> (i32, i32, i32) {
    %c0_i32 = arith.constant 0 : i32
    %c0_i32_0 = arith.constant 0 : i32
    %c0_i32_1 = arith.constant 0 : i32
    return %arg0, %c0_i32, %c0_i32_0 : i32, i32, i32
  }
}

</mosaic_0001>

<llo_original>
// kernel: tpu_custom_call.1
$region0: #{tpu_custom_call.1}
  #allocation0 [shape = 'u32[]', space=smem, size = 0x4, offset = 0x4, fixed_abs, tag = 'smem constant byte address 0x4 - core index']
  #allocation1 [shape = 'u32[72,128]{1,0:T(1,128)}', space=vmem, size = 0x9000, scoped, tag = 'internal scratch']
  %s0 = inlined_call_operand.hbm [shape: f32[49], index: 0, kind: input, shape index: {}]
  %s1 = inlined_call_operand.hbm [shape: f32[2,4,16,16], index: 1, kind: input, shape index: {}]
  %s2 = inlined_call_operand.vmem [shape: f32[2,10,10], index: 2, kind: output, shape index: {}]
  %s3 = sld [smem:[#allocation0]]
  $region49: #{tpu_custom_call.1} parent=0
    _
  %s5 = ssub.s32 1, %s3
  %s6 = scalar_select 0, %s5, %s3
  $region1: #{tpu_custom_call.1} parent=0
    #allocation2 [shape = 'u8[512]{0}', space=smem, size = 0x200, scoped, tag = 'input window, operand 0, single buffered']
    #allocation3 [shape = 's32[2]{0}', space=sflag, size = 0x8, scoped, tag = 'scoped memory for tpu_custom_call.1']
    #allocation4 [shape = 's32[2]{0}', space=sflag, size = 0x8, scoped, tag = 'scoped memory for tpu_custom_call.1']
    #allocation5 [shape = 'u8[65536]{0}', space=vmem, size = 0x10000, scoped, tag = 'input window, operand 1']
    %7 = vsyncpa [#allocation4], 0
    %8 = vsyncpa [#allocation3], 0
    %s9 = scalar_lea.sflag [#allocation3], 1
    %10 = vsyncpa %s9, 0
    loop: start=0, step=1, limit=4
    $region2: #{tpu_custom_call.1} parent=1 // loop_pre_header
      _
    $region3: #{tpu_custom_call.1} parent=1 // loop_header
      %s12 = sphi 0, %s16
      %p13 = scmp.ge.s32.totalorder %s12, 4
      %s20 = sphi 0, %s20
      %s22 = sphi 0, %s20
      %s23 = sphi 0, %s22
      %s37 = sphi 0, %s23
      %s43 = sphi 0, %s45
      %s46 = sphi 0, %s43
      %s47 = sphi 0, %s46
      %s63 = sphi 0, %s47
      %s69 = sphi 0, %s71
      %s72 = sphi 0, %s69
      %s73 = sphi 0, %s72
      %s89 = sphi 0, %s73
    $region4: #{tpu_custom_call.1} parent=1 // loop_header_branch
      %15 = sbr.rel (%p13) target = $region8
    $region5: #{tpu_custom_call.1} parent=1 // loop_body
      %s17 = ssub.s32 %s12, 1
      %s18 = ssub.s32 %s12, 2
      %s19 = sadd.s32 %s12, 1
      %s21 = sadd.s32 %s20, 1
      %p24 = scmp.eq.s32.totalorder %s12, 1
      %p25 = scmp.ne.s32.totalorder %s20, %s22
      %p26 = scmp.eq.s32.totalorder %s12, 0
      %p27 = por %p25, %p26
      %p28 = scmp.ne.s32.totalorder %s20, %s22
      %p29 = scmp.eq.s32.totalorder %s17, 1
      %p30 = por %p28, %p29
      %p31 = scmp.ne.s32.totalorder %s22, %s23
      %p32 = scmp.eq.s32.totalorder %s17, 0
      %p33 = por %p31, %p32
      %p34 = scmp.ne.s32.totalorder %s22, %s23
      %p35 = scmp.eq.s32.totalorder %s18, 1
      %p36 = por %p34, %p35
      %p38 = scmp.ne.s32.totalorder %s23, %s37
      %p39 = scmp.eq.s32.totalorder %s18, 0
      %p40 = por %p38, %p39
      %s41 = ssub.s32 %s12, %s19
      %p42 = scmp.eq.s32.totalorder %s41, 0
      %s44 = sadd.s32 %s43, 1
      %s45 = scalar_select %p42, %s43, %s44
      %p48 = pneg %p42
      %p49 = scmp.eq.s32.totalorder %s12, 1
      %p50 = por %p48, %p49
      %p51 = scmp.ne.s32.totalorder %s43, %s46
      %p52 = scmp.eq.s32.totalorder %s12, 0
      %p53 = por %p51, %p52
      %p54 = scmp.ne.s32.totalorder %s43, %s46
      %p55 = scmp.eq.s32.totalorder %s17, 1
      %p56 = por %p54, %p55
      %p57 = scmp.ne.s32.totalorder %s46, %s47
      %p58 = scmp.eq.s32.totalorder %s17, 0
      %p59 = por %p57, %p58
      %p60 = scmp.ne.s32.totalorder %s46, %s47
      %p61 = scmp.eq.s32.totalorder %s18, 1
      %p62 = por %p60, %p61
      %p64 = scmp.ne.s32.totalorder %s47, %s63
      %p65 = scmp.eq.s32.totalorder %s18, 0
      %p66 = por %p64, %p65
      %s67 = ssub.s32 %s12, %s19
      %p68 = scmp.eq.s32.totalorder %s67, 0
      %s70 = sadd.s32 %s69, 1
      %s71 = scalar_select %p68, %s69, %s70
      %p74 = pneg %p68
      %p75 = scmp.eq.s32.totalorder %s12, 1
      %p76 = por %p74, %p75
      %p77 = scmp.ne.s32.totalorder %s69, %s72
      %p78 = scmp.eq.s32.totalorder %s12, 0
      %p79 = por %p77, %p78
      %p80 = scmp.ne.s32.totalorder %s69, %s72
      %p81 = scmp.eq.s32.totalorder %s17, 1
      %p82 = por %p80, %p81
      %p83 = scmp.ne.s32.totalorder %s72, %s73
      %p84 = scmp.eq.s32.totalorder %s17, 0
      %p85 = por %p83, %p84
      %p86 = scmp.ne.s32.totalorder %s72, %s73
      %p87 = scmp.eq.s32.totalorder %s18, 1
      %p88 = por %p86, %p87
      %p90 = scmp.ne.s32.totalorder %s73, %s89
      %p91 = scmp.eq.s32.totalorder %s18, 0
      %p92 = por %p90, %p91
      %p93 = scmp.le.s32.totalorder 1, %s12
      %p94 = scmp.lt.s32.totalorder %s12, 3
      %p95 = pnand %p93, %p94
      %p96 = pneg %p95
      // Predicated region
      $region9: #{tpu_custom_call.1} parent=5 // pred_check
        _
      $region10: #{tpu_custom_call.1} parent=5 // pred_check_branch
        %98 = sbr.rel (%p95) target = $region12
      $region11: #{tpu_custom_call.1} parent=5 // pred_region
        %s99 = ssub.s32 %s12, 1
        // Predicated region
        $region13: #{tpu_custom_call.1} parent=11 // pred_check
          %p100 = pneg %p33
        $region14: #{tpu_custom_call.1} parent=11 // pred_check_branch
          %102 = sbr.rel (%p100) target = $region16
        $region15: #{tpu_custom_call.1} parent=11 // pred_region
          %104 = vsyncadd [#allocation4], 0
          %s106 = sshll.u32 %s0, 4
          %s107 = int_to_ptr.hbm [resolvable:$true] %s106
          %109 = dma.hbm_to_smem %s107, 16, [#allocation2], [#allocation4]
        $region16: #{tpu_custom_call.1} parent=11 // pred_fallthru
          _
      $region12: #{tpu_custom_call.1} parent=5 // pred_fallthru
        _
      %p110 = scmp.lt.s32.totalorder %s12, 2
      // Predicated region
      $region17: #{tpu_custom_call.1} parent=5 // pred_check
        %p111 = pneg %p110
      $region18: #{tpu_custom_call.1} parent=5 // pred_check_branch
        %113 = sbr.rel (%p111) target = $region20
      $region19: #{tpu_custom_call.1} parent=5 // pred_region
        // Predicated region
        $region21: #{tpu_custom_call.1} parent=19 // pred_check
          %p114 = pneg %p53
        $region22: #{tpu_custom_call.1} parent=19 // pred_check_branch
          %116 = sbr.rel (%p114) target = $region24
        $region23: #{tpu_custom_call.1} parent=19 // pred_region
          %s117 = sand.u32 %s43, 1
          %s118 = scalar_lea.sflag [#allocation3], %s117
          %s119 = sand.u32 %s43, 1
          %s120 = smul.addr %s119, 64
          %s121 = scalar_lea.vmem [#allocation5], %s120
          %123 = vsyncadd %s118, 0
          %s124 = smul.addr %s12, 8
          %s125 = smul.addr %s124, 8
          %s126 = scalar_lea.hbm %s1, %s125
          %s127 = sshll.u32 %s126, 4
          %s128 = int_to_ptr.hbm [resolvable:$true] %s127
          %s129 = sshll.u32 %s121, 4
          %s130 = int_to_ptr.vmem [resolvable:$true] %s129
          %135 = dma.hbm_to_vmem [thread:$0]  %s128, 1024, %s130, %s118, 128, 128, 8
        $region24: #{tpu_custom_call.1} parent=19 // pred_fallthru
          _
      $region20: #{tpu_custom_call.1} parent=5 // pred_fallthru
        _
      %p136 = scmp.le.s32.totalorder 1, %s12
      %p137 = scmp.lt.s32.totalorder %s12, 3
      %p138 = pnand %p136, %p137
      %p139 = pneg %p138
      // Predicated region
      $region25: #{tpu_custom_call.1} parent=5 // pred_check
        _
      $region26: #{tpu_custom_call.1} parent=5 // pred_check_branch
        %141 = sbr.rel (%p138) target = $region28
      $region27: #{tpu_custom_call.1} parent=5 // pred_region
        %s142 = ssub.s32 %s12, 1
        // Predicated region
        $region29: #{tpu_custom_call.1} parent=27 // pred_check
          %p143 = pneg %p33
        $region30: #{tpu_custom_call.1} parent=27 // pred_check_branch
          %145 = sbr.rel (%p143) target = $region32
        $region31: #{tpu_custom_call.1} parent=27 // pred_region
          %147 = dma.done [#allocation4], 16
        $region32: #{tpu_custom_call.1} parent=27 // pred_fallthru
          _
        %s148 = sand.u32 %s46, 1
        %s149 = scalar_lea.sflag [#allocation3], %s148
        %s150 = sand.u32 %s46, 1
        %s151 = smul.addr %s150, 64
        %s152 = scalar_lea.vmem [#allocation5], %s151
        // Predicated region
        $region33: #{tpu_custom_call.1} parent=27 // pred_check
          %p153 = pneg %p59
        $region34: #{tpu_custom_call.1} parent=27 // pred_check_branch
          %155 = sbr.rel (%p153) target = $region36
        $region35: #{tpu_custom_call.1} parent=27 // pred_region
          %157 = dma.done %s149, 1024
        $region36: #{tpu_custom_call.1} parent=27 // pred_fallthru
          _
        %158 = sfence
        %p159 = pneg %p33
        %p160 = pneg %p30
        %s161 = sand.u32 %s46, 1
        %s162 = scalar_lea.sflag [#allocation3], %s161
        %s163 = sand.u32 %s46, 1
        %s164 = smul.addr %s163, 64
        %s165 = scalar_lea.vmem [#allocation5], %s164
        %p166 = pneg %p59
        %p167 = pneg %p56
        %p168 = pneg %p85
        %p169 = pneg %p82
        %p170 = scmp.lt.s32.totalorder %s17, 1
        %s171 = scalar_select %p170, %s17, 1
        %s172 = smul.addr %s171, 2
        %s173 = smul.addr %s172, 8
        %s174 = scalar_lea.vmem %s2, %s173
        %p175 = scmp.lt.s32.totalorder %s17, 1
        %s176 = scalar_select %p175, %s17, 1
        %s177 = smul.addr %s176, 2
        %s178 = smul.addr %s177, 8
        %s179 = scalar_lea.vmem %s2, %s178
        %v180 = vld [vmem:[%s152] sm:$0xff]
        %v181 = vld [vmem:[%s152 + $0x8] sm:$0xff]
        %v182 = vld [vmem:[%s152 + $0x10] sm:$0xff]
        %v183 = vld [vmem:[%s152 + $0x18] sm:$0xff]
        %v184 = vld [vmem:[%s152 + $0x20] sm:$0xff]
        %v185 = vld [vmem:[%s152 + $0x28] sm:$0xff]
        %v186 = vld [vmem:[%s152 + $0x30] sm:$0xff]
        %v187 = vld [vmem:[%s152 + $0x38] sm:$0xff]
        %vm188 = vcmask 130048
        %v189 = vsel %vm188, %v180, 0.0
        %v190 = vsel %vm188, %v182, 0.0
        %v191 = vadd.f32 %v189, %v190
        %v192 = vsel %vm188, %v184, 0.0
        %v193 = vadd.f32 %v191, %v192
        %v194 = vsel %vm188, %v186, 0.0
        %v195 = vadd.f32 %v193, %v194
        %v196 = vsel %vm188, %v181, 0.0
        %v197 = vsel %vm188, %v183, 0.0
        %v198 = vadd.f32 %v196, %v197
        %v199 = vsel %vm188, %v185, 0.0
        %v200 = vadd.f32 %v198, %v199
        %v201 = vsel %vm188, %v187, 0.0
        %v202 = vadd.f32 %v200, %v201
        %s203 = sld [smem:[#allocation2]]
        %v204 = vstv %s203
        %v205 = vmul.f32 %v204, %v195
        %v206 = vmul.f32 %v204, %v202
        %v207 = vadd.f32 %v205, 0.0
        %v208 = vadd.f32 %v206, 0.0
        %s209 = sld [smem:[#allocation2 + $0x1]]
        %v210 = vstv %s209
        %v211 = vmul.f32 %v210, %v195
        %v212 = vmul.f32 %v210, %v202
        %215 = vrot.lane.b32.xlu0 %v211, 127
        %v216 = vpop.permute.xlu0 %215
        %217 = vrot.lane.b32.xlu0 %v212, 127
        %v218 = vpop.permute.xlu0 %217
        %v221 = vadd.f32 %v207, %v216
        %v222 = vadd.f32 %v208, %v218
        %s223 = sld [smem:[#allocation2 + $0x2]]
        %v224 = vstv %s223
        %v225 = vmul.f32 %v224, %v195
        %v226 = vmul.f32 %v224, %v202
        %229 = vrot.lane.b32.xlu0 %v225, 126
        %v230 = vpop.permute.xlu0 %229
        %231 = vrot.lane.b32.xlu0 %v226, 126
        %v232 = vpop.permute.xlu0 %231
        %v235 = vadd.f32 %v221, %v230
        %v236 = vadd.f32 %v222, %v232
        %s237 = sld [smem:[#allocation2 + $0x3]]
        %v238 = vstv %s237
        %v239 = vmul.f32 %v238, %v195
        %v240 = vmul.f32 %v238, %v202
        %243 = vrot.lane.b32.xlu0 %v239, 125
        %v244 = vpop.permute.xlu0 %243
        %245 = vrot.lane.b32.xlu0 %v240, 125
        %v246 = vpop.permute.xlu0 %245
        %v249 = vadd.f32 %v235, %v244
        %v250 = vadd.f32 %v236, %v246
        %s251 = sld [smem:[#allocation2 + $0x4]]
        %v252 = vstv %s251
        %v253 = vmul.f32 %v252, %v195
        %v254 = vmul.f32 %v252, %v202
        %257 = vrot.lane.b32.xlu0 %v253, 124
        %v258 = vpop.permute.xlu0 %257
        %259 = vrot.lane.b32.xlu0 %v254, 124
        %v260 = vpop.permute.xlu0 %259
        %v263 = vadd.f32 %v249, %v258
        %v264 = vadd.f32 %v250, %v260
        %s265 = sld [smem:[#allocation2 + $0x5]]
        %v266 = vstv %s265
        %v267 = vmul.f32 %v266, %v195
        %v268 = vmul.f32 %v266, %v202
        %271 = vrot.lane.b32.xlu0 %v267, 123
        %v272 = vpop.permute.xlu0 %271
        %273 = vrot.lane.b32.xlu0 %v268, 123
        %v274 = vpop.permute.xlu0 %273
        %v277 = vadd.f32 %v263, %v272
        %v278 = vadd.f32 %v264, %v274
        %s279 = sld [smem:[#allocation2 + $0x6]]
        %v280 = vstv %s279
        %v281 = vmul.f32 %v280, %v195
        %v282 = vmul.f32 %v280, %v202
        %285 = vrot.lane.b32.xlu0 %v281, 122
        %v286 = vpop.permute.xlu0 %285
        %287 = vrot.lane.b32.xlu0 %v282, 122
        %v288 = vpop.permute.xlu0 %287
        %v291 = vadd.f32 %v277, %v286
        %v292 = vadd.f32 %v278, %v288
        %s293 = sld [smem:[#allocation2 + $0x7]]
        %v294 = vstv %s293
        %v295 = vmul.f32 %v294, %v195
        %v296 = vmul.f32 %v294, %v202
        %vm299 = vcmask 1046528
        %v300 = vrot.slane %v295, 1
        %v301 = vrot.slane %v296, 1
        %v302 = vsel %vm299, %v300, %v301
        %v305 = vadd.f32 %v291, %v302
        %v306 = vadd.f32 %v292, %v301
        %s307 = sld [smem:[#allocation2 + $0x8]]
        %v308 = vstv %s307
        %v309 = vmul.f32 %v308, %v195
        %v310 = vmul.f32 %v308, %v202
        %v313 = vrot.slane %v309, 1
        %v314 = vrot.slane %v310, 1
        %v315 = vsel %vm299, %v313, %v314
        %316 = vrot.lane.b32.xlu0 %v315, 127
        %v317 = vpop.permute.xlu0 %316
        %318 = vrot.lane.b32.xlu0 %v314, 127
        %v319 = vpop.permute.xlu0 %318
        %v322 = vadd.f32 %v305, %v317
        %v323 = vadd.f32 %v306, %v319
        %s324 = sld [smem:[#allocation2 + $0x9]]
        %v325 = vstv %s324
        %v326 = vmul.f32 %v325, %v195
        %v327 = vmul.f32 %v325, %v202
        %v330 = vrot.slane %v326, 1
        %v331 = vrot.slane %v327, 1
        %v332 = vsel %vm299, %v330, %v331
        %333 = vrot.lane.b32.xlu0 %v332, 126
        %v334 = vpop.permute.xlu0 %333
        %335 = vrot.lane.b32.xlu0 %v331, 126
        %v336 = vpop.permute.xlu0 %335
        %v339 = vadd.f32 %v322, %v334
        %v340 = vadd.f32 %v323, %v336
        %s341 = sld [smem:[#allocation2 + $0xa]]
        %v342 = vstv %s341
        %v343 = vmul.f32 %v342, %v195
        %v344 = vmul.f32 %v342, %v202
        %v347 = vrot.slane %v343, 1
        %v348 = vrot.slane %v344, 1
        %v349 = vsel %vm299, %v347, %v348
        %350 = vrot.lane.b32.xlu0 %v349, 125
        %v351 = vpop.permute.xlu0 %350
        %352 = vrot.lane.b32.xlu0 %v348, 125
        %v353 = vpop.permute.xlu0 %352
        %v356 = vadd.f32 %v339, %v351
        %v357 = vadd.f32 %v340, %v353
        %s358 = sld [smem:[#allocation2 + $0xb]]
        %v359 = vstv %s358
        %v360 = vmul.f32 %v359, %v195
        %v361 = vmul.f32 %v359, %v202
        %v364 = vrot.slane %v360, 1
        %v365 = vrot.slane %v361, 1
        %v366 = vsel %vm299, %v364, %v365
        %367 = vrot.lane.b32.xlu0 %v366, 124
        %v368 = vpop.permute.xlu0 %367
        %369 = vrot.lane.b32.xlu0 %v365, 124
        %v370 = vpop.permute.xlu0 %369
        %v373 = vadd.f32 %v356, %v368
        %v374 = vadd.f32 %v357, %v370
        %s375 = sld [smem:[#allocation2 + $0xc]]
        %v376 = vstv %s375
        %v377 = vmul.f32 %v376, %v195
        %v378 = vmul.f32 %v376, %v202
        %v381 = vrot.slane %v377, 1
        %v382 = vrot.slane %v378, 1
        %v383 = vsel %vm299, %v381, %v382
        %384 = vrot.lane.b32.xlu0 %v383, 123
        %v385 = vpop.permute.xlu0 %384
        %386 = vrot.lane.b32.xlu0 %v382, 123
        %v387 = vpop.permute.xlu0 %386
        %v390 = vadd.f32 %v373, %v385
        %v391 = vadd.f32 %v374, %v387
        %s392 = sld [smem:[#allocation2 + $0xd]]
        %v393 = vstv %s392
        %v394 = vmul.f32 %v393, %v195
        %v395 = vmul.f32 %v393, %v202
        %v398 = vrot.slane %v394, 1
        %v399 = vrot.slane %v395, 1
        %v400 = vsel %vm299, %v398, %v399
        %401 = vrot.lane.b32.xlu0 %v400, 122
        %v402 = vpop.permute.xlu0 %401
        %403 = vrot.lane.b32.xlu0 %v399, 122
        %v404 = vpop.permute.xlu0 %403
        %v407 = vadd.f32 %v390, %v402
        %v408 = vadd.f32 %v391, %v404
        %s409 = sld [smem:[#allocation2 + $0xe]]
        %v410 = vstv %s409
        %v411 = vmul.f32 %v410, %v195
        %v412 = vmul.f32 %v410, %v202
        %vm415 = vcmask 1045504
        %v416 = vrot.slane %v411, 2
        %v417 = vrot.slane %v412, 2
        %v418 = vsel %vm415, %v416, %v417
        %v421 = vadd.f32 %v407, %v418
        %v422 = vadd.f32 %v408, %v417
        %s423 = sld [smem:[#allocation2 + $0xf]]
        %v424 = vstv %s423
        %v425 = vmul.f32 %v424, %v195
        %v426 = vmul.f32 %v424, %v202
        %v429 = vrot.slane %v425, 2
        %v430 = vrot.slane %v426, 2
        %v431 = vsel %vm415, %v429, %v430
        %432 = vrot.lane.b32.xlu0 %v431, 127
        %v433 = vpop.permute.xlu0 %432
        %434 = vrot.lane.b32.xlu0 %v430, 127
        %v435 = vpop.permute.xlu0 %434
        %v438 = vadd.f32 %v421, %v433
        %v439 = vadd.f32 %v422, %v435
        %s440 = sld [smem:[#allocation2 + $0x10]]
        %v441 = vstv %s440
        %v442 = vmul.f32 %v441, %v195
        %v443 = vmul.f32 %v441, %v202
        %v446 = vrot.slane %v442, 2
        %v447 = vrot.slane %v443, 2
        %v448 = vsel %vm415, %v446, %v447
        %449 = vrot.lane.b32.xlu0 %v448, 126
        %v450 = vpop.permute.xlu0 %449
        %451 = vrot.lane.b32.xlu0 %v447, 126
        %v452 = vpop.permute.xlu0 %451
        %v455 = vadd.f32 %v438, %v450
        %v456 = vadd.f32 %v439, %v452
        %s457 = sld [smem:[#allocation2 + $0x11]]
        %v458 = vstv %s457
        %v459 = vmul.f32 %v458, %v195
        %v460 = vmul.f32 %v458, %v202
        %v463 = vrot.slane %v459, 2
        %v464 = vrot.slane %v460, 2
        %v465 = vsel %vm415, %v463, %v464
        %466 = vrot.lane.b32.xlu0 %v465, 125
        %v467 = vpop.permute.xlu0 %466
        %468 = vrot.lane.b32.xlu0 %v464, 125
        %v469 = vpop.permute.xlu0 %468
        %v472 = vadd.f32 %v455, %v467
        %v473 = vadd.f32 %v456, %v469
        %s474 = sld [smem:[#allocation2 + $0x12]]
        %v475 = vstv %s474
        %v476 = vmul.f32 %v475, %v195
        %v477 = vmul.f32 %v475, %v202
        %v480 = vrot.slane %v476, 2
        %v481 = vrot.slane %v477, 2
        %v482 = vsel %vm415, %v480, %v481
        %483 = vrot.lane.b32.xlu0 %v482, 124
        %v484 = vpop.permute.xlu0 %483
        %485 = vrot.lane.b32.xlu0 %v481, 124
        %v486 = vpop.permute.xlu0 %485
        %v489 = vadd.f32 %v472, %v484
        %v490 = vadd.f32 %v473, %v486
        %s491 = sld [smem:[#allocation2 + $0x13]]
        %v492 = vstv %s491
        %v493 = vmul.f32 %v492, %v195
        %v494 = vmul.f32 %v492, %v202
        %v497 = vrot.slane %v493, 2
        %v498 = vrot.slane %v494, 2
        %v499 = vsel %vm415, %v497, %v498
        %500 = vrot.lane.b32.xlu0 %v499, 123
        %v501 = vpop.permute.xlu0 %500
        %502 = vrot.lane.b32.xlu0 %v498, 123
        %v503 = vpop.permute.xlu0 %502
        %v506 = vadd.f32 %v489, %v501
        %v507 = vadd.f32 %v490, %v503
        %s508 = sld [smem:[#allocation2 + $0x14]]
        %v509 = vstv %s508
        %v510 = vmul.f32 %v509, %v195
        %v511 = vmul.f32 %v509, %v202
        %v514 = vrot.slane %v510, 2
        %v515 = vrot.slane %v511, 2
        %v516 = vsel %vm415, %v514, %v515
        %517 = vrot.lane.b32.xlu0 %v516, 122
        %v518 = vpop.permute.xlu0 %517
        %519 = vrot.lane.b32.xlu0 %v515, 122
        %v520 = vpop.permute.xlu0 %519
        %v523 = vadd.f32 %v506, %v518
        %v524 = vadd.f32 %v507, %v520
        %s525 = sld [smem:[#allocation2 + $0x15]]
        %v526 = vstv %s525
        %v527 = vmul.f32 %v526, %v195
        %v528 = vmul.f32 %v526, %v202
        %vm531 = vcmask 1044480
        %v532 = vrot.slane %v527, 3
        %v533 = vrot.slane %v528, 3
        %v534 = vsel %vm531, %v532, %v533
        %v537 = vadd.f32 %v523, %v534
        %v538 = vadd.f32 %v524, %v533
        %s539 = sld [smem:[#allocation2 + $0x16]]
        %v540 = vstv %s539
        %v541 = vmul.f32 %v540, %v195
        %v542 = vmul.f32 %v540, %v202
        %v545 = vrot.slane %v541, 3
        %v546 = vrot.slane %v542, 3
        %v547 = vsel %vm531, %v545, %v546
        %548 = vrot.lane.b32.xlu0 %v547, 127
        %v549 = vpop.permute.xlu0 %548
        %550 = vrot.lane.b32.xlu0 %v546, 127
        %v551 = vpop.permute.xlu0 %550
        %v554 = vadd.f32 %v537, %v549
        %v555 = vadd.f32 %v538, %v551
        %s556 = sld [smem:[#allocation2 + $0x17]]
        %v557 = vstv %s556
        %v558 = vmul.f32 %v557, %v195
        %v559 = vmul.f32 %v557, %v202
        %v562 = vrot.slane %v558, 3
        %v563 = vrot.slane %v559, 3
        %v564 = vsel %vm531, %v562, %v563
        %565 = vrot.lane.b32.xlu0 %v564, 126
        %v566 = vpop.permute.xlu0 %565
        %567 = vrot.lane.b32.xlu0 %v563, 126
        %v568 = vpop.permute.xlu0 %567
        %v571 = vadd.f32 %v554, %v566
        %v572 = vadd.f32 %v555, %v568
        %s573 = sld [smem:[#allocation2 + $0x18]]
        %v574 = vstv %s573
        %v575 = vmul.f32 %v574, %v195
        %v576 = vmul.f32 %v574, %v202
        %v579 = vrot.slane %v575, 3
        %v580 = vrot.slane %v576, 3
        %v581 = vsel %vm531, %v579, %v580
        %582 = vrot.lane.b32.xlu0 %v581, 125
        %v583 = vpop.permute.xlu0 %582
        %584 = vrot.lane.b32.xlu0 %v580, 125
        %v585 = vpop.permute.xlu0 %584
        %v588 = vadd.f32 %v571, %v583
        %v589 = vadd.f32 %v572, %v585
        %s590 = sld [smem:[#allocation2 + $0x19]]
        %v591 = vstv %s590
        %v592 = vmul.f32 %v591, %v195
        %v593 = vmul.f32 %v591, %v202
        %v596 = vrot.slane %v592, 3
        %v597 = vrot.slane %v593, 3
        %v598 = vsel %vm531, %v596, %v597
        %599 = vrot.lane.b32.xlu0 %v598, 124
        %v600 = vpop.permute.xlu0 %599
        %601 = vrot.lane.b32.xlu0 %v597, 124
        %v602 = vpop.permute.xlu0 %601
        %v605 = vadd.f32 %v588, %v600
        %v606 = vadd.f32 %v589, %v602
        %s607 = sld [smem:[#allocation2 + $0x1a]]
        %v608 = vstv %s607
        %v609 = vmul.f32 %v608, %v195
        %v610 = vmul.f32 %v608, %v202
        %v613 = vrot.slane %v609, 3
        %v614 = vrot.slane %v610, 3
        %v615 = vsel %vm531, %v613, %v614
        %616 = vrot.lane.b32.xlu0 %v615, 123
        %v617 = vpop.permute.xlu0 %616
        %618 = vrot.lane.b32.xlu0 %v614, 123
        %v619 = vpop.permute.xlu0 %618
        %v622 = vadd.f32 %v605, %v617
        %v623 = vadd.f32 %v606, %v619
        %s624 = sld [smem:[#allocation2 + $0x1b]]
        %v625 = vstv %s624
        %v626 = vmul.f32 %v625, %v195
        %v627 = vmul.f32 %v625, %v202
        %v630 = vrot.slane %v626, 3
        %v631 = vrot.slane %v627, 3
        %v632 = vsel %vm531, %v630, %v631
        %633 = vrot.lane.b32.xlu0 %v632, 122
        %v634 = vpop.permute.xlu0 %633
        %635 = vrot.lane.b32.xlu0 %v631, 122
        %v636 = vpop.permute.xlu0 %635
        %v639 = vadd.f32 %v622, %v634
        %v640 = vadd.f32 %v623, %v636
        %s641 = sld [smem:[#allocation2 + $0x1c]]
        %v642 = vstv %s641
        %v643 = vmul.f32 %v642, %v195
        %v644 = vmul.f32 %v642, %v202
        %vm647 = vcmask 1043456
        %v648 = vrot.slane %v643, 4
        %v649 = vrot.slane %v644, 4
        %v650 = vsel %vm647, %v648, %v649
        %v653 = vadd.f32 %v639, %v650
        %v654 = vadd.f32 %v640, %v649
        %s655 = sld [smem:[#allocation2 + $0x1d]]
        %v656 = vstv %s655
        %v657 = vmul.f32 %v656, %v195
        %v658 = vmul.f32 %v656, %v202
        %v661 = vrot.slane %v657, 4
        %v662 = vrot.slane %v658, 4
        %v663 = vsel %vm647, %v661, %v662
        %664 = vrot.lane.b32.xlu0 %v663, 127
        %v665 = vpop.permute.xlu0 %664
        %666 = vrot.lane.b32.xlu0 %v662, 127
        %v667 = vpop.permute.xlu0 %666
        %v670 = vadd.f32 %v653, %v665
        %v671 = vadd.f32 %v654, %v667
        %s672 = sld [smem:[#allocation2 + $0x1e]]
        %v673 = vstv %s672
        %v674 = vmul.f32 %v673, %v195
        %v675 = vmul.f32 %v673, %v202
        %v678 = vrot.slane %v674, 4
        %v679 = vrot.slane %v675, 4
        %v680 = vsel %vm647, %v678, %v679
        %681 = vrot.lane.b32.xlu0 %v680, 126
        %v682 = vpop.permute.xlu0 %681
        %683 = vrot.lane.b32.xlu0 %v679, 126
        %v684 = vpop.permute.xlu0 %683
        %v687 = vadd.f32 %v670, %v682
        %v688 = vadd.f32 %v671, %v684
        %s689 = sld [smem:[#allocation2 + $0x1f]]
        %v690 = vstv %s689
        %v691 = vmul.f32 %v690, %v195
        %v692 = vmul.f32 %v690, %v202
        %v695 = vrot.slane %v691, 4
        %v696 = vrot.slane %v692, 4
        %v697 = vsel %vm647, %v695, %v696
        %698 = vrot.lane.b32.xlu0 %v697, 125
        %v699 = vpop.permute.xlu0 %698
        %700 = vrot.lane.b32.xlu0 %v696, 125
        %v701 = vpop.permute.xlu0 %700
        %v704 = vadd.f32 %v687, %v699
        %v705 = vadd.f32 %v688, %v701
        %s706 = sld [smem:[#allocation2 + $0x20]]
        %v707 = vstv %s706
        %v708 = vmul.f32 %v707, %v195
        %v709 = vmul.f32 %v707, %v202
        %v712 = vrot.slane %v708, 4
        %v713 = vrot.slane %v709, 4
        %v714 = vsel %vm647, %v712, %v713
        %715 = vrot.lane.b32.xlu0 %v714, 124
        %v716 = vpop.permute.xlu0 %715
        %717 = vrot.lane.b32.xlu0 %v713, 124
        %v718 = vpop.permute.xlu0 %717
        %v721 = vadd.f32 %v704, %v716
        %v722 = vadd.f32 %v705, %v718
        %s723 = sld [smem:[#allocation2 + $0x21]]
        %v724 = vstv %s723
        %v725 = vmul.f32 %v724, %v195
        %v726 = vmul.f32 %v724, %v202
        %v729 = vrot.slane %v725, 4
        %v730 = vrot.slane %v726, 4
        %v731 = vsel %vm647, %v729, %v730
        %732 = vrot.lane.b32.xlu0 %v731, 123
        %v733 = vpop.permute.xlu0 %732
        %734 = vrot.lane.b32.xlu0 %v730, 123
        %v735 = vpop.permute.xlu0 %734
        %v738 = vadd.f32 %v721, %v733
        %v739 = vadd.f32 %v722, %v735
        %s740 = sld [smem:[#allocation2 + $0x22]]
        %v741 = vstv %s740
        %v742 = vmul.f32 %v741, %v195
        %v743 = vmul.f32 %v741, %v202
        %v746 = vrot.slane %v742, 4
        %v747 = vrot.slane %v743, 4
        %v748 = vsel %vm647, %v746, %v747
        %749 = vrot.lane.b32.xlu0 %v748, 122
        %v750 = vpop.permute.xlu0 %749
        %751 = vrot.lane.b32.xlu0 %v747, 122
        %v752 = vpop.permute.xlu0 %751
        %v755 = vadd.f32 %v738, %v750
        %v756 = vadd.f32 %v739, %v752
        %s757 = sld [smem:[#allocation2 + $0x23]]
        %v758 = vstv %s757
        %v759 = vmul.f32 %v758, %v195
        %v760 = vmul.f32 %v758, %v202
        %vm763 = vcmask 1042432
        %v764 = vrot.slane %v759, 5
        %v765 = vrot.slane %v760, 5
        %v766 = vsel %vm763, %v764, %v765
        %v769 = vadd.f32 %v755, %v766
        %v770 = vadd.f32 %v756, %v765
        %s771 = sld [smem:[#allocation2 + $0x24]]
        %v772 = vstv %s771
        %v773 = vmul.f32 %v772, %v195
        %v774 = vmul.f32 %v772, %v202
        %v777 = vrot.slane %v773, 5
        %v778 = vrot.slane %v774, 5
        %v779 = vsel %vm763, %v777, %v778
        %780 = vrot.lane.b32.xlu0 %v779, 127
        %v781 = vpop.permute.xlu0 %780
        %782 = vrot.lane.b32.xlu0 %v778, 127
        %v783 = vpop.permute.xlu0 %782
        %v786 = vadd.f32 %v769, %v781
        %v787 = vadd.f32 %v770, %v783
        %s788 = sld [smem:[#allocation2 + $0x25]]
        %v789 = vstv %s788
        %v790 = vmul.f32 %v789, %v195
        %v791 = vmul.f32 %v789, %v202
        %v794 = vrot.slane %v790, 5
        %v795 = vrot.slane %v791, 5
        %v796 = vsel %vm763, %v794, %v795
        %797 = vrot.lane.b32.xlu0 %v796, 126
        %v798 = vpop.permute.xlu0 %797
        %799 = vrot.lane.b32.xlu0 %v795, 126
        %v800 = vpop.permute.xlu0 %799
        %v803 = vadd.f32 %v786, %v798
        %v804 = vadd.f32 %v787, %v800
        %s805 = sld [smem:[#allocation2 + $0x26]]
        %v806 = vstv %s805
        %v807 = vmul.f32 %v806, %v195
        %v808 = vmul.f32 %v806, %v202
        %v811 = vrot.slane %v807, 5
        %v812 = vrot.slane %v808, 5
        %v813 = vsel %vm763, %v811, %v812
        %814 = vrot.lane.b32.xlu0 %v813, 125
        %v815 = vpop.permute.xlu0 %814
        %816 = vrot.lane.b32.xlu0 %v812, 125
        %v817 = vpop.permute.xlu0 %816
        %v820 = vadd.f32 %v803, %v815
        %v821 = vadd.f32 %v804, %v817
        %s822 = sld [smem:[#allocation2 + $0x27]]
        %v823 = vstv %s822
        %v824 = vmul.f32 %v823, %v195
        %v825 = vmul.f32 %v823, %v202
        %v828 = vrot.slane %v824, 5
        %v829 = vrot.slane %v825, 5
        %v830 = vsel %vm763, %v828, %v829
        %831 = vrot.lane.b32.xlu0 %v830, 124
        %v832 = vpop.permute.xlu0 %831
        %833 = vrot.lane.b32.xlu0 %v829, 124
        %v834 = vpop.permute.xlu0 %833
        %v837 = vadd.f32 %v820, %v832
        %v838 = vadd.f32 %v821, %v834
        %s839 = sld [smem:[#allocation2 + $0x28]]
        %v840 = vstv %s839
        %v841 = vmul.f32 %v840, %v195
        %v842 = vmul.f32 %v840, %v202
        %v845 = vrot.slane %v841, 5
        %v846 = vrot.slane %v842, 5
        %v847 = vsel %vm763, %v845, %v846
        %848 = vrot.lane.b32.xlu0 %v847, 123
        %v849 = vpop.permute.xlu0 %848
        %850 = vrot.lane.b32.xlu0 %v846, 123
        %v851 = vpop.permute.xlu0 %850
        %v854 = vadd.f32 %v837, %v849
        %v855 = vadd.f32 %v838, %v851
        %s856 = sld [smem:[#allocation2 + $0x29]]
        %v857 = vstv %s856
        %v858 = vmul.f32 %v857, %v195
        %v859 = vmul.f32 %v857, %v202
        %v862 = vrot.slane %v858, 5
        %v863 = vrot.slane %v859, 5
        %v864 = vsel %vm763, %v862, %v863
        %865 = vrot.lane.b32.xlu0 %v864, 122
        %v866 = vpop.permute.xlu0 %865
        %867 = vrot.lane.b32.xlu0 %v863, 122
        %v868 = vpop.permute.xlu0 %867
        %v871 = vadd.f32 %v854, %v866
        %v872 = vadd.f32 %v855, %v868
        %s873 = sld [smem:[#allocation2 + $0x2a]]
        %v874 = vstv %s873
        %v875 = vmul.f32 %v874, %v195
        %v876 = vmul.f32 %v874, %v202
        %vm879 = vcmask 1041408
        %v880 = vrot.slane %v875, 6
        %v881 = vrot.slane %v876, 6
        %v882 = vsel %vm879, %v880, %v881
        %v885 = vadd.f32 %v871, %v882
        %v886 = vadd.f32 %v872, %v881
        %s887 = sld [smem:[#allocation2 + $0x2b]]
        %v888 = vstv %s887
        %v889 = vmul.f32 %v888, %v195
        %v890 = vmul.f32 %v888, %v202
        %v893 = vrot.slane %v889, 6
        %v894 = vrot.slane %v890, 6
        %v895 = vsel %vm879, %v893, %v894
        %896 = vrot.lane.b32.xlu0 %v895, 127
        %v897 = vpop.permute.xlu0 %896
        %898 = vrot.lane.b32.xlu0 %v894, 127
        %v899 = vpop.permute.xlu0 %898
        %v902 = vadd.f32 %v885, %v897
        %v903 = vadd.f32 %v886, %v899
        %s904 = sld [smem:[#allocation2 + $0x2c]]
        %v905 = vstv %s904
        %v906 = vmul.f32 %v905, %v195
        %v907 = vmul.f32 %v905, %v202
        %v910 = vrot.slane %v906, 6
        %v911 = vrot.slane %v907, 6
        %v912 = vsel %vm879, %v910, %v911
        %913 = vrot.lane.b32.xlu0 %v912, 126
        %v914 = vpop.permute.xlu0 %913
        %915 = vrot.lane.b32.xlu0 %v911, 126
        %v916 = vpop.permute.xlu0 %915
        %v919 = vadd.f32 %v902, %v914
        %v920 = vadd.f32 %v903, %v916
        %s921 = sld [smem:[#allocation2 + $0x2d]]
        %v922 = vstv %s921
        %v923 = vmul.f32 %v922, %v195
        %v924 = vmul.f32 %v922, %v202
        %v927 = vrot.slane %v923, 6
        %v928 = vrot.slane %v924, 6
        %v929 = vsel %vm879, %v927, %v928
        %930 = vrot.lane.b32.xlu0 %v929, 125
        %v931 = vpop.permute.xlu0 %930
        %932 = vrot.lane.b32.xlu0 %v928, 125
        %v933 = vpop.permute.xlu0 %932
        %v936 = vadd.f32 %v919, %v931
        %v937 = vadd.f32 %v920, %v933
        %s938 = sld [smem:[#allocation2 + $0x2e]]
        %v939 = vstv %s938
        %v940 = vmul.f32 %v939, %v195
        %v941 = vmul.f32 %v939, %v202
        %v944 = vrot.slane %v940, 6
        %v945 = vrot.slane %v941, 6
        %v946 = vsel %vm879, %v944, %v945
        %947 = vrot.lane.b32.xlu0 %v946, 124
        %v948 = vpop.permute.xlu0 %947
        %949 = vrot.lane.b32.xlu0 %v945, 124
        %v950 = vpop.permute.xlu0 %949
        %v953 = vadd.f32 %v936, %v948
        %v954 = vadd.f32 %v937, %v950
        %s955 = sld [smem:[#allocation2 + $0x2f]]
        %v956 = vstv %s955
        %v957 = vmul.f32 %v956, %v195
        %v958 = vmul.f32 %v956, %v202
        %v961 = vrot.slane %v957, 6
        %v962 = vrot.slane %v958, 6
        %v963 = vsel %vm879, %v961, %v962
        %964 = vrot.lane.b32.xlu0 %v963, 123
        %v965 = vpop.permute.xlu0 %964
        %966 = vrot.lane.b32.xlu0 %v962, 123
        %v967 = vpop.permute.xlu0 %966
        %v970 = vadd.f32 %v953, %v965
        %v971 = vadd.f32 %v954, %v967
        %s972 = sld [smem:[#allocation2 + $0x30]]
        %v973 = vstv %s972
        %v974 = vmul.f32 %v973, %v195
        %v975 = vmul.f32 %v973, %v202
        %v978 = vrot.slane %v974, 6
        %v979 = vrot.slane %v975, 6
        %v980 = vsel %vm879, %v978, %v979
        %981 = vrot.lane.b32.xlu0 %v980, 122
        %v982 = vpop.permute.xlu0 %981
        %983 = vrot.lane.b32.xlu0 %v979, 122
        %v984 = vpop.permute.xlu0 %983
        %v987 = vadd.f32 %v970, %v982
        %v988 = vadd.f32 %v971, %v984
        %vm989 = vcmask 80896
        %990 = vst.msk [vmem:[%s179] sm:$0xff] %vm989, %v987
        %vm991 = vcmask 74752
        %992 = vst.msk [vmem:[%s179 + $0x8] sm:$0x3] %vm991, %v988
        %p993 = scmp.lt.s32.totalorder %s17, 1
        %s994 = scalar_select %p993, %s17, 1
        %s995 = smul.addr %s994, 2
        %s996 = smul.addr %s995, 8
        %s997 = scalar_lea.vmem %s2, %s996
        // Predicated region
        $region37: #{tpu_custom_call.1} parent=27 // pred_check
          %p998 = pneg %p82
        $region38: #{tpu_custom_call.1} parent=27 // pred_check_branch
          %1000 = sbr.rel (%p998) target = $region40
        $region39: #{tpu_custom_call.1} parent=27 // pred_region
          _
        $region40: #{tpu_custom_call.1} parent=27 // pred_fallthru
          _
      $region28: #{tpu_custom_call.1} parent=5 // pred_fallthru
        _
      %p1001 = scmp.le.s32.totalorder 2, %s12
      // Predicated region
      $region41: #{tpu_custom_call.1} parent=5 // pred_check
        %p1002 = pneg %p1001
      $region42: #{tpu_custom_call.1} parent=5 // pred_check_branch
        %1004 = sbr.rel (%p1002) target = $region44
      $region43: #{tpu_custom_call.1} parent=5 // pred_region
        %s1005 = ssub.s32 %s12, 2
        // Predicated region
        $region45: #{tpu_custom_call.1} parent=43 // pred_check
          %p1006 = pneg %p88
        $region46: #{tpu_custom_call.1} parent=43 // pred_check_branch
          %1008 = sbr.rel (%p1006) target = $region48
        $region47: #{tpu_custom_call.1} parent=43 // pred_region
          %p1009 = scmp.lt.s32.totalorder %s18, 1
          %s1010 = scalar_select %p1009, %s18, 1
          %s1011 = smul.addr %s1010, 2
          %s1012 = smul.addr %s1011, 8
          %s1013 = scalar_lea.vmem %s2, %s1012
        $region48: #{tpu_custom_call.1} parent=43 // pred_fallthru
          _
      $region44: #{tpu_custom_call.1} parent=5 // pred_fallthru
        _
    $region6: #{tpu_custom_call.1} parent=1 // loop_footer
      %s16 = sadd.s32 1, %s12
    $region7: #{tpu_custom_call.1} parent=1 // loop_footer_branch
      %11 = sbr.rel target = $region3
    $region8: #{tpu_custom_call.1} parent=1 // loop_exit
      _
    %1014 = vsyncpa [#allocation3], 1
    %s1015 = scalar_lea.sflag [#allocation3], 1
    %1016 = vsyncpa %s1015, 1
    %1017 = vsyncpa [#allocation4], 1
    %s1018 = scalar_lea.sflag [#allocation4], 1
    %1019 = vsyncpa %s1018, 1

</llo_original>
